<compile_context>
chip_gen: v5e
topology: v5e:2x2
jax: 0.10.0
libtpu: 0.0.40
codegen_flags: <defaults>
</compile_context>

<pallas_src>
import functools

import jax
import jax.numpy as jnp
from jax.experimental import pallas as pl
from jax.experimental.pallas import tpu as pltpu


# ----------------------------- kernel -------------------------------------


def _grpo_loss_kernel(lp_ref, old_ref, refp_ref, mask_ref, adv_ref,
                      loss_num_ref, mask_sum_ref, kl_sum_ref,
                      loss_acc, mask_acc, kl_acc,
                      *, clip_eps, kl_weight, fold_width):
    j = pl.program_id(1)   # seq-tile index ("arbitrary" accumulation axis)

    @pl.when(j == 0)
    def _init():
        loss_acc[...] = jnp.zeros_like(loss_acc)
        mask_acc[...] = jnp.zeros_like(mask_acc)
        kl_acc[...] = jnp.zeros_like(kl_acc)

    lp = lp_ref[...].astype(jnp.float32)       # (bb, tt)
    old = old_ref[...].astype(jnp.float32)     # (bb, tt)
    lref = refp_ref[...].astype(jnp.float32)   # (bb, tt)
    mask = mask_ref[...].astype(jnp.float32)   # (bb, tt)
    adv = adv_ref[...].astype(jnp.float32)     # (bb, 1), per-tile block

    # approx_kl_divergence (k3 estimator), mask applied to the log-ratio.
    log_ratio = (lref - lp) * mask
    kl = jnp.exp(log_ratio) - log_ratio - 1.0

    # Clipped surrogate.  -min(r*a, clip(r)*a) == -a*min(r,c) if a>=0 else -a*max(r,c).
    ratio = jnp.exp(lp - old)
    clipped = jnp.clip(ratio, 1.0 - clip_eps, 1.0 + clip_eps)
    pg = jnp.where(adv >= 0.0, jnp.minimum(ratio, clipped),
                   jnp.maximum(ratio, clipped))
    loss = kl_weight * kl - pg * adv

    tt = lp.shape[-1]

    def lane_fold(x):
        # Fold (bb, tt) -> (bb, fold_width) with lane-aligned elementwise (VPU) adds;
        # no XLU reduction and no narrow store on the steady-state path.
        acc = x[:, :fold_width]
        for c in range(1, tt // fold_width):
            acc = acc + x[:, c * fold_width:(c + 1) * fold_width]
        return acc

    loss_acc[...] += lane_fold(loss * mask)
    mask_acc[...] += lane_fold(mask)
    kl_acc[...] += lane_fold(kl)

    @pl.when(j == pl.num_programs(1) - 1)
    def _finalize():
        loss_num_ref[...] = jnp.sum(loss_acc[...], axis=-1, keepdims=True)
        mask_sum_ref[...] = jnp.sum(mask_acc[...], axis=-1, keepdims=True)
        kl_sum_ref[...] = jnp.sum(kl_acc[...], axis=-1, keepdims=True)


# --------------------------- block sizing ----------------------------------


def _sublane_multiple(dtype):
    return {4: 8, 2: 16, 1: 32}.get(jnp.dtype(dtype).itemsize, 8)


def _vmem_capacity_bytes():
    try:
        return int(pltpu.get_tpu_info().vmem_capacity_bytes)
    except Exception:
        return 64 << 20   # conservative fallback (v7x per-TensorCore)


def _pick_seq_block(T, max_lane_elems=8192):
    # Full rows unless T is very large; keep the lane dim a multiple of 128.
    if T <= max_lane_elems or T % 128 != 0:
        return T
    tt = (max_lane_elems // 128) * 128
    while tt >= 128:
        if T % tt == 0:
            return tt
        tt -= 128
    return T


def _pick_batch_block(B, tt, sub_mult, target_elems):
    cap = max(sub_mult, target_elems // max(tt, 1))
    if B >= 2 * sub_mult:
        # Keep grid[0] >= 2 so both v7x TensorCores get work (no-op impact on 1-TC
        # chips beyond one extra grid step).
        cap = min(cap, B // 2)
    cands = {B}                                   # full dim is always legal
    d = sub_mult
    while d <= B:
        if B % d == 0:
            cands.add(d)
        d += sub_mult
    cands = sorted(cands)
    under = [d for d in cands if d <= cap]
    return under[-1] if under else cands[0]


# ----------------------------- wrapper -------------------------------------


def grpo_loss(log_probs, old_log_probs, log_probs_ref, action_mask, advantages,
              *, clip_eps=0.2, kl_weight=0.04,
              batch_block=None, seq_block=None, target_block_elems=None,
              mask_is_binary=False, input_buffer_count=2):
    """GRPO actor loss forward pass.

    bf16 log-prob inputs are accepted (upcast in-kernel); note that the exp()
    arguments are then formed after bf16 rounding.  `mask_is_binary=True` lets a
    float mask be downcast to int8 (only valid for strictly {0,1} masks).
    """
    B, T = log_probs.shape
    assert advantages.shape == (B, 1)

    # Binary-mask downcast: bool always (exact); other dtypes only if asserted binary.
    if action_mask.dtype == jnp.bool_ or mask_is_binary:
        action_mask = action_mask.astype(jnp.int8)

    row_inputs = (log_probs, old_log_probs, log_probs_ref, action_mask)
    sub_mult = max(_sublane_multiple(a.dtype) for a in row_inputs)

    vmem_cap = _vmem_capacity_bytes()
    ceiling = (3 * vmem_cap) // 4                 # ~48 MiB on v7x, ~96 MiB on v5e/v6e
    if target_block_elems is None:
        # Bigger tiles where 128 MiB VMEM is available (v5e/v6e), modest on v7x.
        target_block_elems = (1 << 19) if vmem_cap >= (100 << 20) else (1 << 18)

    tt = seq_block if seq_block is not None else _pick_seq_block(T)
    bb = (batch_block if batch_block is not None
          else _pick_batch_block(B, tt, sub_mult, target_block_elems))

    assert T % tt == 0 and (tt == T or tt % 128 == 0), (T, tt)
    assert B % bb == 0 and (bb == B or bb % sub_mult == 0), (B, bb, sub_mult)

    grid = (B // bb, T // tt)
    fw = 128 if tt % 128 == 0 else tt             # lane-dense fold width

    # ---- VMEM budget (lane padding included; never capped below need) ----
    n_buf = max(2, int(input_buffer_count))
    itemsize = lambda a: jnp.dtype(a.dtype).itemsize
    bb_pad = ((bb + 7) // 8) * 8
    fw_pad = ((fw + 127) // 128) * 128
    tile_in_bytes = sum(bb * tt * itemsize(a) for a in row_inputs)
    narrow_block = bb_pad * 128 * 4               # (bb, 1) f32 block, lane-padded
    needed = (n_buf * tile_in_bytes               # (double+)-buffered input tiles
              + 2 * narrow_block                  # advantages block
              + 3 * 2 * narrow_block              # three (bb, 1) outputs
              + 3 * bb_pad * fw_pad * 4)          # lane-dense scratch accumulators
    vmem_limit = min(needed + (4 << 20), ceiling)
    vmem_limit = int(max(vmem_limit, needed, 16 << 20))

    kernel = functools.partial(
        _grpo_loss_kernel,
        clip_eps=float(clip_eps),
        kl_weight=float(kl_weight),
        fold_width=fw,
    )

    if n_buf > 2:
        row_spec = pl.BlockSpec((bb, tt), lambda i, j: (i, j),
                                pipeline_mode=pl.Buffered(n_buf))
    else:
        row_spec = pl.BlockSpec((bb, tt), lambda i, j: (i, j))
    adv_spec = pl.BlockSpec((bb, 1), lambda i, j: (i, 0))     # per-tile, const along seq
    out_spec = pl.BlockSpec((bb, 1), lambda i, j: (i, 0))     # resident across seq axis

    out_shape = (jax.ShapeDtypeStruct((B, 1), jnp.float32),   # per-row loss numerator
                 jax.ShapeDtypeStruct((B, 1), jnp.float32),   # per-row mask sum
                 jax.ShapeDtypeStruct((B, 1), jnp.float32))   # per-row kl sum

    loss_num, mask_sum, kl_sum = pl.pallas_call(
        kernel,
        out_shape=out_shape,
        grid_spec=pltpu.PrefetchScalarGridSpec(
            num_scalar_prefetch=0,
            grid=grid,
            in_specs=[row_spec, row_spec, row_spec, row_spec, adv_spec],
            out_specs=(out_spec, out_spec, out_spec),
            scratch_shapes=[pltpu.VMEM((bb, fw), jnp.float32)] * 3,
        ),
        compiler_params=pltpu.CompilerParams(
            dimension_semantics=("parallel", "arbitrary"),
            vmem_limit_bytes=vmem_limit,
        ),
    )(log_probs, old_log_probs, log_probs_ref, action_mask, advantages)

    # Tiny final reduction (B elements) in plain JAX.
    loss = jnp.mean(loss_num / mask_sum)           # masked row means -> batch mean
    kl_mean = jnp.sum(kl_sum) / (B * T)            # kl.mean() over all elements
    return loss, kl_mean


# --------------------------- plain-JAX reference ----------------------------


def grpo_loss_ref(log_probs, old_log_probs, log_probs_ref, action_mask,
                  advantages, *, clip_eps=0.2, kl_weight=0.04):
    log_ratio = (log_probs_ref - log_probs) * action_mask
    kl = jnp.exp(log_ratio) - log_ratio - 1.0
    ratio = jnp.exp(log_probs - old_log_probs)
    surr1 = ratio * advantages
    surr2 = jnp.clip(ratio, 1.0 - clip_eps, 1.0 + clip_eps) * advantages
    loss = -jnp.minimum(surr1, surr2) + kl_weight * kl
    loss = jnp.mean(jnp.sum(loss * action_mask, -1) / jnp.sum(action_mask, -1))
    return loss, jnp.mean(kl)


# --------------------------------- test -------------------------------------


if __name__ == "__main__":
    clip_eps, kl_weight = 0.2, 0.04

    def make_inputs(key, B, T):
        k1, k2, k3, k4, k5 = jax.random.split(key, 5)
        lp = -jax.nn.softplus(jax.random.normal(k1, (B, T), jnp.float32))
        old = lp + 0.1 * jax.random.normal(k2, (B, T), jnp.float32)
        lref = lp + 0.1 * jax.random.normal(k3, (B, T), jnp.float32)
        adv = jax.random.normal(k4, (B, 1), jnp.float32)
        mask = (jax.random.uniform(k5, (B, T)) < 0.7)
        mask = mask.at[:, 0].set(True)            # keep every row non-empty
        return lp, old, lref, mask, adv

    key = jax.random.PRNGKey(0)
    k_a, k_b = jax.random.split(key)

    # --- test 1: small shape, auto tiling, float mask -----------------------
    lp, old, lref, mask, adv = make_inputs(k_a, 16, 128)
    mask_f = mask.astype(jnp.float32)
    loss, kl_mean = grpo_loss(lp, old, lref, mask_f, adv,
                              clip_eps=clip_eps, kl_weight=kl_weight)
    jax.block_until_ready((loss, kl_mean))
    ref_loss, ref_kl = grpo_loss_ref(lp, old, lref, mask_f, adv,
                                     clip_eps=clip_eps, kl_weight=kl_weight)
    assert jnp.allclose(loss, ref_loss, rtol=1e-5, atol=1e-5), (loss, ref_loss)
    assert jnp.allclose(kl_mean, ref_kl, rtol=1e-5, atol=1e-5), (kl_mean, ref_kl)

    # --- test 2: forced multi-block 2-D grid (parallel batch + seq accumulation) ---
    lp, old, lref, mask, adv = make_inputs(k_b, 32, 512)
    mask_f = mask.astype(jnp.float32)
    loss, kl_mean = grpo_loss(lp, old, lref, mask_f, adv,
                              clip_eps=clip_eps, kl_weight=kl_weight,
                              batch_block=8, seq_block=128)
    jax.block_until_ready((loss, kl_mean))
    ref_loss, ref_kl = grpo_loss_ref(lp, old, lref, mask_f, adv,
                                     clip_eps=clip_eps, kl_weight=kl_weight)
    assert jnp.allclose(loss, ref_loss, rtol=1e-5, atol=1e-5), (loss, ref_loss)
    assert jnp.allclose(kl_mean, ref_kl, rtol=1e-5, atol=1e-5), (kl_mean, ref_kl)

    # --- test 3: low-bandwidth mask path (bool -> int8, upcast in-kernel) ---
    loss8, kl8 = grpo_loss(lp, old, lref, mask, adv,          # bool mask
                           clip_eps=clip_eps, kl_weight=kl_weight)
    jax.block_until_ready((loss8, kl8))
    assert jnp.allclose(loss8, ref_loss, rtol=1e-5, atol=1e-5), (loss8, ref_loss)
    assert jnp.allclose(kl8, ref_kl, rtol=1e-5, atol=1e-5), (kl8, ref_kl)

    print("KERNEL_OK")
</pallas_src>

<mosaic_0001>
module attributes {stable_mosaic.version = 11 : i64} {
  func.func @_grpo_loss_kernel(%arg0: i32, %arg1: i32, %arg2: memref<8x128xf32, #tpu.memory_space<vmem>>, %arg3: memref<8x128xf32, #tpu.memory_space<vmem>>, %arg4: memref<8x128xf32, #tpu.memory_space<vmem>>, %arg5: memref<8x128xf32, #tpu.memory_space<vmem>>, %arg6: memref<8x1xf32, #tpu.memory_space<vmem>>, %arg7: memref<8x1xf32, #tpu.memory_space<vmem>>, %arg8: memref<8x1xf32, #tpu.memory_space<vmem>>, %arg9: memref<8x1xf32, #tpu.memory_space<vmem>>, %arg10: memref<8x128xf32, #tpu.memory_space<vmem>>, %arg11: memref<8x128xf32, #tpu.memory_space<vmem>>, %arg12: memref<8x128xf32, #tpu.memory_space<vmem>>) attributes {dimension_semantics = [#tpu.dimension_semantics<parallel>, #tpu.dimension_semantics<arbitrary>], iteration_bounds = array<i64: 2, 1>, scalar_prefetch = 0 : i64, scratch_operands = 3 : i64, tpu.core_type = #tpu.core_type<tc>, window_params = [{transform_indices = @transform_0, window_bounds = array<i64: 8, 128>}, {transform_indices = @transform_1, window_bounds = array<i64: 8, 128>}, {transform_indices = @transform_2, window_bounds = array<i64: 8, 128>}, {transform_indices = @transform_3, window_bounds = array<i64: 8, 128>}, {transform_indices = @transform_4, window_bounds = array<i64: 8, 1>}, {transform_indices = @transform_5, window_bounds = array<i64: 8, 1>}, {transform_indices = @transform_6, window_bounds = array<i64: 8, 1>}, {transform_indices = @transform_7, window_bounds = array<i64: 8, 1>}]} {
    %c0_i32 = arith.constant 0 : i32
    %0 = arith.cmpi eq, %arg1, %c0_i32 : i32
    %1 = arith.extui %0 : i1 to i32
    %c0_i32_0 = arith.constant 0 : i32
    %2 = arith.cmpi ne, %1, %c0_i32_0 : i32
    scf.if %2 {
      %cst_28 = arith.constant 0.000000e+00 : f32
      %45 = vector.broadcast %cst_28 : f32 to vector<8x128xf32>
      %c0_29 = arith.constant 0 : index
      %c0_30 = arith.constant 0 : index
      %46 = vector.load %arg10[%c0_29, %c0_30] : memref<8x128xf32, #tpu.memory_space<vmem>>, vector<8x128xf32>
      tpu.vector_store %arg10[%c0_29, %c0_30], %45 {strides = array<i32>} : memref<8x128xf32, #tpu.memory_space<vmem>>, vector<8x128xf32>,
      %cst_31 = arith.constant 0.000000e+00 : f32
      %47 = vector.broadcast %cst_31 : f32 to vector<8x128xf32>
      %c0_32 = arith.constant 0 : index
      %c0_33 = arith.constant 0 : index
      %48 = vector.load %arg11[%c0_32, %c0_33] : memref<8x128xf32, #tpu.memory_space<vmem>>, vector<8x128xf32>
      tpu.vector_store %arg11[%c0_32, %c0_33], %47 {strides = array<i32>} : memref<8x128xf32, #tpu.memory_space<vmem>>, vector<8x128xf32>,
      %cst_34 = arith.constant 0.000000e+00 : f32
      %49 = vector.broadcast %cst_34 : f32 to vector<8x128xf32>
      %c0_35 = arith.constant 0 : index
      %c0_36 = arith.constant 0 : index
      %50 = vector.load %arg12[%c0_35, %c0_36] : memref<8x128xf32, #tpu.memory_space<vmem>>, vector<8x128xf32>
      tpu.vector_store %arg12[%c0_35, %c0_36], %49 {strides = array<i32>} : memref<8x128xf32, #tpu.memory_space<vmem>>, vector<8x128xf32>,
    } else {
    }
    %c0 = arith.constant 0 : index
    %c0_1 = arith.constant 0 : index
    %3 = vector.load %arg2[%c0, %c0_1] : memref<8x128xf32, #tpu.memory_space<vmem>>, vector<8x128xf32>
    %c0_2 = arith.constant 0 : index
    %c0_3 = arith.constant 0 : index
    %4 = vector.load %arg3[%c0_2, %c0_3] : memref<8x128xf32, #tpu.memory_space<vmem>>, vector<8x128xf32>
    %c0_4 = arith.constant 0 : index
    %c0_5 = arith.constant 0 : index
    %5 = vector.load %arg4[%c0_4, %c0_5] : memref<8x128xf32, #tpu.memory_space<vmem>>, vector<8x128xf32>
    %c0_6 = arith.constant 0 : index
    %c0_7 = arith.constant 0 : index
    %6 = vector.load %arg5[%c0_6, %c0_7] : memref<8x128xf32, #tpu.memory_space<vmem>>, vector<8x128xf32>
    %c0_8 = arith.constant 0 : index
    %c0_9 = arith.constant 0 : index
    %7 = vector.load %arg6[%c0_8, %c0_9] : memref<8x1xf32, #tpu.memory_space<vmem>>, vector<8x1xf32>
    %8 = arith.subf %5, %3 : vector<8x128xf32>
    %9 = arith.mulf %8, %6 : vector<8x128xf32>
    %10 = math.exp %9 : vector<8x128xf32>
    %11 = arith.subf %10, %9 : vector<8x128xf32>
    %cst = arith.constant 1.000000e+00 : f32
    %12 = vector.broadcast %cst : f32 to vector<8x128xf32>
    %13 = arith.subf %11, %12 : vector<8x128xf32>
    %14 = arith.subf %3, %4 : vector<8x128xf32>
    %15 = math.exp %14 : vector<8x128xf32>
    %cst_10 = arith.constant 8.000000e-01 : f32
    %cst_11 = arith.constant 1.200000e+00 : f32
    %16 = vector.broadcast %cst_10 : f32 to vector<8x128xf32>
    %17 = arith.maximumf %16, %15 : vector<8x128xf32>
    %18 = vector.broadcast %cst_11 : f32 to vector<8x128xf32>
    %19 = arith.minimumf %18, %17 : vector<8x128xf32>
    %cst_12 = arith.constant 0.000000e+00 : f32
    %20 = vector.broadcast %cst_12 : f32 to vector<8x1xf32>
    %21 = arith.cmpf oge, %7, %20 : vector<8x1xf32>
    %22 = arith.minimumf %15, %19 : vector<8x128xf32>
    %23 = arith.maximumf %15, %19 : vector<8x128xf32>
    %24 = vector.shape_cast %21 : vector<8x1xi1> to vector<8x1xi1>
    %25 = vector.broadcast %24 : vector<8x1xi1> to vector<8x128xi1>
    %26 = arith.select %25, %22, %23 : vector<8x128xi1>, vector<8x128xf32>
    %cst_13 = arith.constant 4.000000e-02 : f32
    %27 = vector.broadcast %cst_13 : f32 to vector<8x128xf32>
    %28 = arith.mulf %27, %13 : vector<8x128xf32>
    %29 = vector.broadcast %7 : vector<8x1xf32> to vector<8x128xf32>
    %30 = arith.mulf %26, %29 : vector<8x128xf32>
    %31 = arith.subf %28, %30 : vector<8x128xf32>
    %c0_14 = arith.constant 0 : index
    %c0_15 = arith.constant 0 : index
    %32 = vector.load %arg10[%c0_14, %c0_15] : memref<8x128xf32, #tpu.memory_space<vmem>>, vector<8x128xf32>
    %33 = arith.mulf %31, %6 : vector<8x128xf32>
    %34 = arith.addf %32, %33 : vector<8x128xf32>
    %c0_16 = arith.constant 0 : index
    %c0_17 = arith.constant 0 : index
    %35 = vector.load %arg10[%c0_16, %c0_17] : memref<8x128xf32, #tpu.memory_space<vmem>>, vector<8x128xf32>
    tpu.vector_store %arg10[%c0_16, %c0_17], %34 {strides = array<i32>} : memref<8x128xf32, #tpu.memory_space<vmem>>, vector<8x128xf32>,
    %c0_18 = arith.constant 0 : index
    %c0_19 = arith.constant 0 : index
    %36 = vector.load %arg11[%c0_18, %c0_19] : memref<8x128xf32, #tpu.memory_space<vmem>>, vector<8x128xf32>
    %37 = arith.addf %36, %6 : vector<8x128xf32>
    %c0_20 = arith.constant 0 : index
    %c0_21 = arith.constant 0 : index
    %38 = vector.load %arg11[%c0_20, %c0_21] : memref<8x128xf32, #tpu.memory_space<vmem>>, vector<8x128xf32>
    tpu.vector_store %arg11[%c0_20, %c0_21], %37 {strides = array<i32>} : memref<8x128xf32, #tpu.memory_space<vmem>>, vector<8x128xf32>,
    %c0_22 = arith.constant 0 : index
    %c0_23 = arith.constant 0 : index
    %39 = vector.load %arg12[%c0_22, %c0_23] : memref<8x128xf32, #tpu.memory_space<vmem>>, vector<8x128xf32>
    %40 = arith.addf %39, %13 : vector<8x128xf32>
    %c0_24 = arith.constant 0 : index
    %c0_25 = arith.constant 0 : index
    %41 = vector.load %arg12[%c0_24, %c0_25] : memref<8x128xf32, #tpu.memory_space<vmem>>, vector<8x128xf32>
    tpu.vector_store %arg12[%c0_24, %c0_25], %40 {strides = array<i32>} : memref<8x128xf32, #tpu.memory_space<vmem>>, vector<8x128xf32>,
    %c0_i32_26 = arith.constant 0 : i32
    %42 = arith.cmpi eq, %arg1, %c0_i32_26 : i32
    %43 = arith.extui %42 : i1 to i32
    %c0_i32_27 = arith.constant 0 : i32
    %44 = arith.cmpi ne, %43, %c0_i32_27 : i32
    scf.if %44 {
      %c0_28 = arith.constant 0 : index
      %c0_29 = arith.constant 0 : index
      %45 = vector.load %arg10[%c0_28, %c0_29] : memref<8x128xf32, #tpu.memory_space<vmem>>, vector<8x128xf32>
      %cst_30 = arith.constant dense<0.000000e+00> : vector<8xf32>
      %46 = vector.multi_reduction <add>, %45, %cst_30 [1] : vector<8x128xf32> to vector<8xf32>
      %47 = vector.shape_cast %46 : vector<8xf32> to vector<8x1xf32>
      %c0_31 = arith.constant 0 : index
      %c0_32 = arith.constant 0 : index
      %48 = vector.load %arg7[%c0_31, %c0_32] : memref<8x1xf32, #tpu.memory_space<vmem>>, vector<8x1xf32>
      tpu.vector_store %arg7[%c0_31, %c0_32], %47 {strides = array<i32>} : memref<8x1xf32, #tpu.memory_space<vmem>>, vector<8x1xf32>,
      %c0_33 = arith.constant 0 : index
      %c0_34 = arith.constant 0 : index
      %49 = vector.load %arg11[%c0_33, %c0_34] : memref<8x128xf32, #tpu.memory_space<vmem>>, vector<8x128xf32>
      %cst_35 = arith.constant dense<0.000000e+00> : vector<8xf32>
      %50 = vector.multi_reduction <add>, %49, %cst_35 [1] : vector<8x128xf32> to vector<8xf32>
      %51 = vector.shape_cast %50 : vector<8xf32> to vector<8x1xf32>
      %c0_36 = arith.constant 0 : index
      %c0_37 = arith.constant 0 : index
      %52 = vector.load %arg8[%c0_36, %c0_37] : memref<8x1xf32, #tpu.memory_space<vmem>>, vector<8x1xf32>
      tpu.vector_store %arg8[%c0_36, %c0_37], %51 {strides = array<i32>} : memref<8x1xf32, #tpu.memory_space<vmem>>, vector<8x1xf32>,
      %c0_38 = arith.constant 0 : index
      %c0_39 = arith.constant 0 : index
      %53 = vector.load %arg12[%c0_38, %c0_39] : memref<8x128xf32, #tpu.memory_space<vmem>>, vector<8x128xf32>
      %cst_40 = arith.constant dense<0.000000e+00> : vector<8xf32>
      %54 = vector.multi_reduction <add>, %53, %cst_40 [1] : vector<8x128xf32> to vector<8xf32>
      %55 = vector.shape_cast %54 : vector<8xf32> to vector<8x1xf32>
      %c0_41 = arith.constant 0 : index
      %c0_42 = arith.constant 0 : index
      %56 = vector.load %arg9[%c0_41, %c0_42] : memref<8x1xf32, #tpu.memory_space<vmem>>, vector<8x1xf32>
      tpu.vector_store %arg9[%c0_41, %c0_42], %55 {strides = array<i32>} : memref<8x1xf32, #tpu.memory_space<vmem>>, vector<8x1xf32>,
    } else {
    }
    return
  }
  func.func @transform_0(%arg0: i32, %arg1: i32) -> (i32, i32) {
    %c0_i32 = arith.constant 0 : i32
    return %arg0, %arg1 : i32, i32
  }
  func.func @transform_1(%arg0: i32, %arg1: i32) -> (i32, i32) {
    %c0_i32 = arith.constant 0 : i32
    return %arg0, %arg1 : i32, i32
  }
  func.func @transform_2(%arg0: i32, %arg1: i32) -> (i32, i32) {
    %c0_i32 = arith.constant 0 : i32
    return %arg0, %arg1 : i32, i32
  }
  func.func @transform_3(%arg0: i32, %arg1: i32) -> (i32, i32) {
    %c0_i32 = arith.constant 0 : i32
    return %arg0, %arg1 : i32, i32
  }
  func.func @transform_4(%arg0: i32, %arg1: i32) -> (i32, i32) {
    %c0_i32 = arith.constant 0 : i32
    %c0_i32_0 = arith.constant 0 : i32
    return %arg0, %c0_i32 : i32, i32
  }
  func.func @transform_5(%arg0: i32, %arg1: i32) -> (i32, i32) {
    %c0_i32 = arith.constant 0 : i32
    %c0_i32_0 = arith.constant 0 : i32
    return %arg0, %c0_i32 : i32, i32
  }
  func.func @transform_6(%arg0: i32, %arg1: i32) -> (i32, i32) {
    %c0_i32 = arith.constant 0 : i32
    %c0_i32_0 = arith.constant 0 : i32
    return %arg0, %c0_i32 : i32, i32
  }
  func.func @transform_7(%arg0: i32, %arg1: i32) -> (i32, i32) {
    %c0_i32 = arith.constant 0 : i32
    %c0_i32_0 = arith.constant 0 : i32
    return %arg0, %c0_i32 : i32, i32
  }
}

</mosaic_0001>

<llo_original>
// kernel: tpu_custom_call.1
$region0: #{tpu_custom_call.1}
  #allocation0 [shape = 'u32[]', space=smem, size = 0x4, offset = 0x4, fixed_abs, tag = 'smem constant byte address 0x4 - core index']
  #allocation1 [shape = 'u32[72,128]{1,0:T(1,128)}', space=vmem, size = 0x9000, scoped, tag = 'internal scratch']
  #allocation2 [shape = 'f32[8,128]{1,0:T(8,128)}', space=vmem, size = 0x1000, scoped, tag = 'scratch operand']
  #allocation3 [shape = 'f32[8,128]{1,0:T(8,128)}', space=vmem, size = 0x1000, scoped, tag = 'scratch operand']
  #allocation4 [shape = 'f32[8,128]{1,0:T(8,128)}', space=vmem, size = 0x1000, scoped, tag = 'scratch operand']
  %s0 = inlined_call_operand.vmem [shape: f32[16,128], index: 0, kind: input, shape index: {}]
  %s1 = inlined_call_operand.hbm [shape: f32[16,128], index: 1, kind: input, shape index: {}]
  %s2 = inlined_call_operand.hbm [shape: f32[16,128], index: 2, kind: input, shape index: {}]
  %s3 = inlined_call_operand.hbm [shape: f32[16,128], index: 3, kind: input, shape index: {}]
  %s4 = inlined_call_operand.vmem [shape: f32[16,1], index: 4, kind: input, shape index: {}]
  %s5 = inlined_call_operand.vmem [shape: f32[16,1], index: 5, kind: output, shape index: {0}]
  %s6 = inlined_call_operand.vmem [shape: f32[16,1], index: 6, kind: output, shape index: {1}]
  %s7 = inlined_call_operand.vmem [shape: f32[16,1], index: 7, kind: output, shape index: {2}]
  %8 = xla_tuple %s5, %s6, %s7
  %s9 = sld [smem:[#allocation0]]
  $region89: #{tpu_custom_call.1} parent=0
    _
  %s11 = ssub.s32 1, %s9
  %s12 = scalar_select 0, %s11, %s9
  $region1: #{tpu_custom_call.1} parent=0
    #allocation5 [shape = 'u8[8192]{0}', space=vmem, size = 0x2000, scoped, tag = 'input window, operand 1']
    #allocation6 [shape = 's32[2]{0}', space=sflag, size = 0x8, scoped, tag = 'scoped memory for tpu_custom_call.1']
    #allocation7 [shape = 'u8[8192]{0}', space=vmem, size = 0x2000, scoped, tag = 'input window, operand 2']
    #allocation8 [shape = 's32[2]{0}', space=sflag, size = 0x8, scoped, tag = 'scoped memory for tpu_custom_call.1']
    #allocation9 [shape = 'u8[8192]{0}', space=vmem, size = 0x2000, scoped, tag = 'input window, operand 3']
    %13 = vsyncpa [#allocation6], 0
    %s14 = scalar_lea.sflag [#allocation6], 1
    %15 = vsyncpa %s14, 0
    %16 = vsyncpa [#allocation8], 0
    %s17 = scalar_lea.sflag [#allocation8], 1
    %18 = vsyncpa %s17, 0
    loop: start=0, step=1, limit=4
    $region2: #{tpu_custom_call.1} parent=1 // loop_pre_header
      _
    $region3: #{tpu_custom_call.1} parent=1 // loop_header
      %s20 = sphi 0, %s24
      %p21 = scmp.ge.s32.totalorder %s20, 4
      %s27 = sphi 0, %s39
      %s28 = sphi 0, %s35
      %s29 = sphi 0, %s27
      %s30 = sphi 0, %s28
      %s31 = sphi 0, %s29
      %s32 = sphi 0, %s30
      %s44 = sphi 0, %s46
      %s47 = sphi 0, %s44
      %s48 = sphi 0, %s47
      %s64 = sphi 0, %s48
      %s72 = sphi 0, %s74
      %s75 = sphi 0, %s72
      %s76 = sphi 0, %s75
      %s92 = sphi 0, %s76
      %s100 = sphi 0, %s102
      %s103 = sphi 0, %s100
      %s104 = sphi 0, %s103
      %s120 = sphi 0, %s104
      %s128 = sphi 0, %s130
      %s131 = sphi 0, %s128
      %s132 = sphi 0, %s131
      %s148 = sphi 0, %s132
      %s154 = sphi 0, %s156
      %s157 = sphi 0, %s154
      %s158 = sphi 0, %s157
      %s174 = sphi 0, %s158
      %s180 = sphi 0, %s182
      %s183 = sphi 0, %s180
      %s184 = sphi 0, %s183
      %s200 = sphi 0, %s184
      %s206 = sphi 0, %s208
      %s209 = sphi 0, %s206
      %s210 = sphi 0, %s209
      %s226 = sphi 0, %s210
      %s232 = sphi 0, %s234
      %s235 = sphi 0, %s232
      %s236 = sphi 0, %s235
      %s252 = sphi 0, %s236
    $region4: #{tpu_custom_call.1} parent=1 // loop_header_branch
      %23 = sbr.rel (%p21) target = $region8
    $region5: #{tpu_custom_call.1} parent=1 // loop_body
      %s25 = ssub.s32 %s20, 1
      %s26 = ssub.s32 %s20, 2
      %s33 = sadd.s32 1, %s28
      %p34 = scmp.ge.s32.totalorder %s33, 1
      %s35 = scalar_select %p34, 0, %s33
      %s36 = sadd.s32 1, %s27
      %s37 = scalar_select %p34, %s36, %s27
      %p38 = scmp.ge.s32.totalorder %s37, 2
      %s39 = scalar_select %p38, 0, %s37
      %s40 = ssub.s32 %s27, %s39
      %s41 = ssub.s32 %s28, %s35
      %s42 = sor.u32 %s40, %s41
      %p43 = scmp.eq.s32.totalorder %s42, 0
      %s45 = sadd.s32 %s44, 1
      %s46 = scalar_select %p43, %s44, %s45
      %p49 = pneg %p43
      %p50 = scmp.eq.s32.totalorder %s20, 1
      %p51 = por %p49, %p50
      %p52 = scmp.ne.s32.totalorder %s44, %s47
      %p53 = scmp.eq.s32.totalorder %s20, 0
      %p54 = por %p52, %p53
      %p55 = scmp.ne.s32.totalorder %s44, %s47
      %p56 = scmp.eq.s32.totalorder %s25, 1
      %p57 = por %p55, %p56
      %p58 = scmp.ne.s32.totalorder %s47, %s48
      %p59 = scmp.eq.s32.totalorder %s25, 0
      %p60 = por %p58, %p59
      %p61 = scmp.ne.s32.totalorder %s47, %s48
      %p62 = scmp.eq.s32.totalorder %s26, 1
      %p63 = por %p61, %p62
      %p65 = scmp.ne.s32.totalorder %s48, %s64
      %p66 = scmp.eq.s32.totalorder %s26, 0
      %p67 = por %p65, %p66
      %s68 = ssub.s32 %s27, %s39
      %s69 = ssub.s32 %s28, %s35
      %s70 = sor.u32 %s68, %s69
      %p71 = scmp.eq.s32.totalorder %s70, 0
      %s73 = sadd.s32 %s72, 1
      %s74 = scalar_select %p71, %s72, %s73
      %p77 = pneg %p71
      %p78 = scmp.eq.s32.totalorder %s20, 1
      %p79 = por %p77, %p78
      %p80 = scmp.ne.s32.totalorder %s72, %s75
      %p81 = scmp.eq.s32.totalorder %s20, 0
      %p82 = por %p80, %p81
      %p83 = scmp.ne.s32.totalorder %s72, %s75
      %p84 = scmp.eq.s32.totalorder %s25, 1
      %p85 = por %p83, %p84
      %p86 = scmp.ne.s32.totalorder %s75, %s76
      %p87 = scmp.eq.s32.totalorder %s25, 0
      %p88 = por %p86, %p87
      %p89 = scmp.ne.s32.totalorder %s75, %s76
      %p90 = scmp.eq.s32.totalorder %s26, 1
      %p91 = por %p89, %p90
      %p93 = scmp.ne.s32.totalorder %s76, %s92
      %p94 = scmp.eq.s32.totalorder %s26, 0
      %p95 = por %p93, %p94
      %s96 = ssub.s32 %s27, %s39
      %s97 = ssub.s32 %s28, %s35
      %s98 = sor.u32 %s96, %s97
      %p99 = scmp.eq.s32.totalorder %s98, 0
      %s101 = sadd.s32 %s100, 1
      %s102 = scalar_select %p99, %s100, %s101
      %p105 = pneg %p99
      %p106 = scmp.eq.s32.totalorder %s20, 1
      %p107 = por %p105, %p106
      %p108 = scmp.ne.s32.totalorder %s100, %s103
      %p109 = scmp.eq.s32.totalorder %s20, 0
      %p110 = por %p108, %p109
      %p111 = scmp.ne.s32.totalorder %s100, %s103
      %p112 = scmp.eq.s32.totalorder %s25, 1
      %p113 = por %p111, %p112
      %p114 = scmp.ne.s32.totalorder %s103, %s104
      %p115 = scmp.eq.s32.totalorder %s25, 0
      %p116 = por %p114, %p115
      %p117 = scmp.ne.s32.totalorder %s103, %s104
      %p118 = scmp.eq.s32.totalorder %s26, 1
      %p119 = por %p117, %p118
      %p121 = scmp.ne.s32.totalorder %s104, %s120
      %p122 = scmp.eq.s32.totalorder %s26, 0
      %p123 = por %p121, %p122
      %s124 = ssub.s32 %s27, %s39
      %s125 = ssub.s32 %s28, %s35
      %s126 = sor.u32 %s124, %s125
      %p127 = scmp.eq.s32.totalorder %s126, 0
      %s129 = sadd.s32 %s128, 1
      %s130 = scalar_select %p127, %s128, %s129
      %p133 = pneg %p127
      %p134 = scmp.eq.s32.totalorder %s20, 1
      %p135 = por %p133, %p134
      %p136 = scmp.ne.s32.totalorder %s128, %s131
      %p137 = scmp.eq.s32.totalorder %s20, 0
      %p138 = por %p136, %p137
      %p139 = scmp.ne.s32.totalorder %s128, %s131
      %p140 = scmp.eq.s32.totalorder %s25, 1
      %p141 = por %p139, %p140
      %p142 = scmp.ne.s32.totalorder %s131, %s132
      %p143 = scmp.eq.s32.totalorder %s25, 0
      %p144 = por %p142, %p143
      %p145 = scmp.ne.s32.totalorder %s131, %s132
      %p146 = scmp.eq.s32.totalorder %s26, 1
      %p147 = por %p145, %p146
      %p149 = scmp.ne.s32.totalorder %s132, %s148
      %p150 = scmp.eq.s32.totalorder %s26, 0
      %p151 = por %p149, %p150
      %s152 = ssub.s32 %s27, %s39
      %p153 = scmp.eq.s32.totalorder %s152, 0
      %s155 = sadd.s32 %s154, 1
      %s156 = scalar_select %p153, %s154, %s155
      %p159 = pneg %p153
      %p160 = scmp.eq.s32.totalorder %s20, 1
      %p161 = por %p159, %p160
      %p162 = scmp.ne.s32.totalorder %s154, %s157
      %p163 = scmp.eq.s32.totalorder %s20, 0
      %p164 = por %p162, %p163
      %p165 = scmp.ne.s32.totalorder %s154, %s157
      %p166 = scmp.eq.s32.totalorder %s25, 1
      %p167 = por %p165, %p166
      %p168 = scmp.ne.s32.totalorder %s157, %s158
      %p169 = scmp.eq.s32.totalorder %s25, 0
      %p170 = por %p168, %p169
      %p171 = scmp.ne.s32.totalorder %s157, %s158
      %p172 = scmp.eq.s32.totalorder %s26, 1
      %p173 = por %p171, %p172
      %p175 = scmp.ne.s32.totalorder %s158, %s174
      %p176 = scmp.eq.s32.totalorder %s26, 0
      %p177 = por %p175, %p176
      %s178 = ssub.s32 %s27, %s39
      %p179 = scmp.eq.s32.totalorder %s178, 0
      %s181 = sadd.s32 %s180, 1
      %s182 = scalar_select %p179, %s180, %s181
      %p185 = pneg %p179
      %p186 = scmp.eq.s32.totalorder %s20, 1
      %p187 = por %p185, %p186
      %p188 = scmp.ne.s32.totalorder %s180, %s183
      %p189 = scmp.eq.s32.totalorder %s20, 0
      %p190 = por %p188, %p189
      %p191 = scmp.ne.s32.totalorder %s180, %s183
      %p192 = scmp.eq.s32.totalorder %s25, 1
      %p193 = por %p191, %p192
      %p194 = scmp.ne.s32.totalorder %s183, %s184
      %p195 = scmp.eq.s32.totalorder %s25, 0
      %p196 = por %p194, %p195
      %p197 = scmp.ne.s32.totalorder %s183, %s184
      %p198 = scmp.eq.s32.totalorder %s26, 1
      %p199 = por %p197, %p198
      %p201 = scmp.ne.s32.totalorder %s184, %s200
      %p202 = scmp.eq.s32.totalorder %s26, 0
      %p203 = por %p201, %p202
      %s204 = ssub.s32 %s27, %s39
      %p205 = scmp.eq.s32.totalorder %s204, 0
      %s207 = sadd.s32 %s206, 1
      %s208 = scalar_select %p205, %s206, %s207
      %p211 = pneg %p205
      %p212 = scmp.eq.s32.totalorder %s20, 1
      %p213 = por %p211, %p212
      %p214 = scmp.ne.s32.totalorder %s206, %s209
      %p215 = scmp.eq.s32.totalorder %s20, 0
      %p216 = por %p214, %p215
      %p217 = scmp.ne.s32.totalorder %s206, %s209
      %p218 = scmp.eq.s32.totalorder %s25, 1
      %p219 = por %p217, %p218
      %p220 = scmp.ne.s32.totalorder %s209, %s210
      %p221 = scmp.eq.s32.totalorder %s25, 0
      %p222 = por %p220, %p221
      %p223 = scmp.ne.s32.totalorder %s209, %s210
      %p224 = scmp.eq.s32.totalorder %s26, 1
      %p225 = por %p223, %p224
      %p227 = scmp.ne.s32.totalorder %s210, %s226
      %p228 = scmp.eq.s32.totalorder %s26, 0
      %p229 = por %p227, %p228
      %s230 = ssub.s32 %s27, %s39
      %p231 = scmp.eq.s32.totalorder %s230, 0
      %s233 = sadd.s32 %s232, 1
      %s234 = scalar_select %p231, %s232, %s233
      %p237 = pneg %p231
      %p238 = scmp.eq.s32.totalorder %s20, 1
      %p239 = por %p237, %p238
      %p240 = scmp.ne.s32.totalorder %s232, %s235
      %p241 = scmp.eq.s32.totalorder %s20, 0
      %p242 = por %p240, %p241
      %p243 = scmp.ne.s32.totalorder %s232, %s235
      %p244 = scmp.eq.s32.totalorder %s25, 1
      %p245 = por %p243, %p244
      %p246 = scmp.ne.s32.totalorder %s235, %s236
      %p247 = scmp.eq.s32.totalorder %s25, 0
      %p248 = por %p246, %p247
      %p249 = scmp.ne.s32.totalorder %s235, %s236
      %p250 = scmp.eq.s32.totalorder %s26, 1
      %p251 = por %p249, %p250
      %p253 = scmp.ne.s32.totalorder %s236, %s252
      %p254 = scmp.eq.s32.totalorder %s26, 0
      %p255 = por %p253, %p254
      %p256 = scmp.le.s32.totalorder 1, %s20
      %p257 = scmp.lt.s32.totalorder %s20, 3
      %p258 = pnand %p256, %p257
      %p259 = pneg %p258
      // Predicated region
      $region9: #{tpu_custom_call.1} parent=5 // pred_check
        _
      $region10: #{tpu_custom_call.1} parent=5 // pred_check_branch
        %261 = sbr.rel (%p258) target = $region12
      $region11: #{tpu_custom_call.1} parent=5 // pred_region
        %s262 = ssub.s32 %s20, 1
      $region12: #{tpu_custom_call.1} parent=5 // pred_fallthru
        _
      %p263 = scmp.lt.s32.totalorder %s20, 2
      // Predicated region
      $region13: #{tpu_custom_call.1} parent=5 // pred_check
        %p264 = pneg %p263
      $region14: #{tpu_custom_call.1} parent=5 // pred_check_branch
        %266 = sbr.rel (%p264) target = $region16
      $region15: #{tpu_custom_call.1} parent=5 // pred_region
        // Predicated region
        $region17: #{tpu_custom_call.1} parent=15 // pred_check
          %p267 = pneg %p54
        $region18: #{tpu_custom_call.1} parent=15 // pred_check_branch
          %269 = sbr.rel (%p267) target = $region20
        $region19: #{tpu_custom_call.1} parent=15 // pred_region
          %p270 = scmp.lt.s32.totalorder %s27, 1
          %s271 = scalar_select %p270, %s27, 1
          %p272 = scmp.lt.s32.totalorder %s28, 0
          %s273 = scalar_select %p272, %s28, 0
          %s274 = sadd.s32 %s273, %s271
          %s275 = smul.addr %s274, 8
          %s276 = scalar_lea.vmem %s0, %s275
        $region20: #{tpu_custom_call.1} parent=15 // pred_fallthru
          _
        // Predicated region
        $region21: #{tpu_custom_call.1} parent=15 // pred_check
          %p277 = pneg %p82
        $region22: #{tpu_custom_call.1} parent=15 // pred_check_branch
          %279 = sbr.rel (%p277) target = $region24
        $region23: #{tpu_custom_call.1} parent=15 // pred_region
          %s280 = sand.u32 %s72, 1
          %s281 = scalar_lea.sflag [#allocation6], %s280
          %s282 = sand.u32 %s72, 1
          %s283 = smul.addr %s282, 8
          %s284 = scalar_lea.vmem [#allocation5], %s283
          %286 = vsyncadd %s281, 0
          %s287 = sadd.s32 %s28, %s27
          %s288 = smul.addr %s287, 8
          %s289 = scalar_lea.hbm %s1, %s288
          %s291 = sshll.u32 %s289, 4
          %s292 = int_to_ptr.hbm [resolvable:$true] %s291
          %s293 = sshll.u32 %s284, 4
          %s294 = int_to_ptr.vmem [resolvable:$true] %s293
          %296 = dma.hbm_to_vmem [thread:$0]  %s292, 128, %s294, %s281
        $region24: #{tpu_custom_call.1} parent=15 // pred_fallthru
          _
        // Predicated region
        $region25: #{tpu_custom_call.1} parent=15 // pred_check
          %p297 = pneg %p110
        $region26: #{tpu_custom_call.1} parent=15 // pred_check_branch
          %299 = sbr.rel (%p297) target = $region28
        $region27: #{tpu_custom_call.1} parent=15 // pred_region
          %s300 = sand.u32 %s20, 1
          %s301 = scalar_lea.sflag [#allocation8], %s300
          %s302 = sand.u32 %s100, 1
          %s303 = smul.addr %s302, 8
          %s304 = scalar_lea.vmem [#allocation7], %s303
          %306 = vsyncadd %s301, 0
          %s307 = sadd.s32 %s28, %s27
          %s308 = smul.addr %s307, 8
          %s309 = scalar_lea.hbm %s2, %s308
          %s311 = sshll.u32 %s309, 4
          %s312 = int_to_ptr.hbm [resolvable:$true] %s311
          %s313 = sshll.u32 %s304, 4
          %s314 = int_to_ptr.vmem [resolvable:$true] %s313
          %316 = dma.hbm_to_vmem [thread:$0]  %s312, 128, %s314, %s301
        $region28: #{tpu_custom_call.1} parent=15 // pred_fallthru
          _
        // Predicated region
        $region29: #{tpu_custom_call.1} parent=15 // pred_check
          %p317 = pneg %p138
        $region30: #{tpu_custom_call.1} parent=15 // pred_check_branch
          %319 = sbr.rel (%p317) target = $region32
        $region31: #{tpu_custom_call.1} parent=15 // pred_region
          %s320 = sand.u32 %s20, 1
          %s321 = scalar_lea.sflag [#allocation8], %s320
          %s322 = sand.u32 %s128, 1
          %s323 = smul.addr %s322, 8
          %s324 = scalar_lea.vmem [#allocation9], %s323
          %326 = vsyncadd %s321, 0
          %s327 = sadd.s32 %s28, %s27
          %s328 = smul.addr %s327, 8
          %s329 = scalar_lea.hbm %s3, %s328
          %s331 = sshll.u32 %s329, 4
          %s332 = int_to_ptr.hbm [resolvable:$true] %s331
          %s333 = sshll.u32 %s324, 4
          %s334 = int_to_ptr.vmem [resolvable:$true] %s333
          %336 = dma.hbm_to_vmem [thread:$0]  %s332, 128, %s334, %s321
        $region32: #{tpu_custom_call.1} parent=15 // pred_fallthru
          _
        // Predicated region
        $region33: #{tpu_custom_call.1} parent=15 // pred_check
          %p337 = pneg %p164
        $region34: #{tpu_custom_call.1} parent=15 // pred_check_branch
          %339 = sbr.rel (%p337) target = $region36
        $region35: #{tpu_custom_call.1} parent=15 // pred_region
          %p340 = scmp.lt.s32.totalorder %s27, 1
          %s341 = scalar_select %p340, %s27, 1
          %s342 = smul.addr %s341, 8
          %s343 = scalar_lea.vmem %s4, %s342
        $region36: #{tpu_custom_call.1} parent=15 // pred_fallthru
          _
      $region16: #{tpu_custom_call.1} parent=5 // pred_fallthru
        _
      %p344 = scmp.le.s32.totalorder 1, %s20
      %p345 = scmp.lt.s32.totalorder %s20, 3
      %p346 = pnand %p344, %p345
      %p347 = pneg %p346
      // Predicated region
      $region37: #{tpu_custom_call.1} parent=5 // pred_check
        _
      $region38: #{tpu_custom_call.1} parent=5 // pred_check_branch
        %349 = sbr.rel (%p346) target = $region40
      $region39: #{tpu_custom_call.1} parent=5 // pred_region
        %s350 = ssub.s32 %s20, 1
        %s351 = sand.u32 %s75, 1
        %s352 = scalar_lea.sflag [#allocation6], %s351
        %s353 = sand.u32 %s75, 1
        %s354 = smul.addr %s353, 8
        %s355 = scalar_lea.vmem [#allocation5], %s354
        // Predicated region
        $region41: #{tpu_custom_call.1} parent=39 // pred_check
          %p356 = pneg %p88
        $region42: #{tpu_custom_call.1} parent=39 // pred_check_branch
          %358 = sbr.rel (%p356) target = $region44
        $region43: #{tpu_custom_call.1} parent=39 // pred_region
          %360 = dma.done %s352, 128
        $region44: #{tpu_custom_call.1} parent=39 // pred_fallthru
          _
        %s361 = sand.u32 %s25, 1
        %s362 = scalar_lea.sflag [#allocation8], %s361
        %s363 = sand.u32 %s103, 1
        %s364 = smul.addr %s363, 8
        %s365 = scalar_lea.vmem [#allocation7], %s364
        // Predicated region
        $region45: #{tpu_custom_call.1} parent=39 // pred_check
          %p366 = pneg %p116
        $region46: #{tpu_custom_call.1} parent=39 // pred_check_branch
          %368 = sbr.rel (%p366) target = $region48
        $region47: #{tpu_custom_call.1} parent=39 // pred_region
          %370 = dma.done %s362, 128
        $region48: #{tpu_custom_call.1} parent=39 // pred_fallthru
          _
        %s371 = sand.u32 %s25, 1
        %s372 = scalar_lea.sflag [#allocation8], %s371
        %s373 = sand.u32 %s131, 1
        %s374 = smul.addr %s373, 8
        %s375 = scalar_lea.vmem [#allocation9], %s374
        // Predicated region
        $region49: #{tpu_custom_call.1} parent=39 // pred_check
          %p376 = pneg %p144
        $region50: #{tpu_custom_call.1} parent=39 // pred_check_branch
          %378 = sbr.rel (%p376) target = $region52
        $region51: #{tpu_custom_call.1} parent=39 // pred_region
          %380 = dma.done %s372, 128
        $region52: #{tpu_custom_call.1} parent=39 // pred_fallthru
          _
        %p381 = scmp.lt.s32.totalorder %s29, 1
        %s382 = scalar_select %p381, %s29, 1
        %p383 = scmp.lt.s32.totalorder %s30, 0
        %s384 = scalar_select %p383, %s30, 0
        %s385 = sadd.s32 %s384, %s382
        %s386 = smul.addr %s385, 8
        %s387 = scalar_lea.vmem %s0, %s386
        %p388 = pneg %p60
        %p389 = pneg %p57
        %s390 = sand.u32 %s75, 1
        %s391 = scalar_lea.sflag [#allocation6], %s390
        %s392 = sand.u32 %s75, 1
        %s393 = smul.addr %s392, 8
        %s394 = scalar_lea.vmem [#allocation5], %s393
        %p395 = pneg %p88
        %p396 = pneg %p85
        %s397 = sand.u32 %s25, 1
        %s398 = scalar_lea.sflag [#allocation8], %s397
        %s399 = sand.u32 %s103, 1
        %s400 = smul.addr %s399, 8
        %s401 = scalar_lea.vmem [#allocation7], %s400
        %p402 = pneg %p116
        %p403 = pneg %p113
        %s404 = sand.u32 %s25, 1
        %s405 = scalar_lea.sflag [#allocation8], %s404
        %s406 = sand.u32 %s131, 1
        %s407 = smul.addr %s406, 8
        %s408 = scalar_lea.vmem [#allocation9], %s407
        %p409 = pneg %p144
        %p410 = pneg %p141
        %p411 = scmp.lt.s32.totalorder %s29, 1
        %s412 = scalar_select %p411, %s29, 1
        %s413 = smul.addr %s412, 8
        %s414 = scalar_lea.vmem %s4, %s413
        %p415 = pneg %p170
        %p416 = pneg %p167
        %p417 = pneg %p196
        %p418 = pneg %p193
        %p419 = scmp.lt.s32.totalorder %s29, 1
        %s420 = scalar_select %p419, %s29, 1
        %s421 = smul.addr %s420, 8
        %s422 = scalar_lea.vmem %s5, %s421
        %p423 = pneg %p222
        %p424 = pneg %p219
        %p425 = scmp.lt.s32.totalorder %s29, 1
        %s426 = scalar_select %p425, %s29, 1
        %s427 = smul.addr %s426, 8
        %s428 = scalar_lea.vmem %s6, %s427
        %p429 = pneg %p248
        %p430 = pneg %p245
        %p431 = scmp.lt.s32.totalorder %s29, 1
        %s432 = scalar_select %p431, %s29, 1
        %s433 = smul.addr %s432, 8
        %s434 = scalar_lea.vmem %s7, %s433
        %p435 = scmp.lt.s32.totalorder %s29, 1
        %s436 = scalar_select %p435, %s29, 1
        %p437 = scmp.lt.s32.totalorder %s30, 0
        %s438 = scalar_select %p437, %s30, 0
        %s439 = sadd.s32 %s438, %s436
        %s440 = smul.addr %s439, 8
        %s441 = scalar_lea.vmem %s0, %s440
        %p442 = scmp.lt.s32.totalorder %s29, 1
        %s443 = scalar_select %p442, %s29, 1
        %s444 = smul.addr %s443, 8
        %s445 = scalar_lea.vmem %s4, %s444
        %p446 = scmp.lt.s32.totalorder %s29, 1
        %s447 = scalar_select %p446, %s29, 1
        %s448 = smul.addr %s447, 8
        %s449 = scalar_lea.vmem %s5, %s448
        %p450 = scmp.lt.s32.totalorder %s29, 1
        %s451 = scalar_select %p450, %s29, 1
        %s452 = smul.addr %s451, 8
        %s453 = scalar_lea.vmem %s6, %s452
        %p454 = scmp.lt.s32.totalorder %s29, 1
        %s455 = scalar_select %p454, %s29, 1
        %s456 = smul.addr %s455, 8
        %s457 = scalar_lea.vmem %s7, %s456
        %p458 = scmp.eq.s32.totalorder %s30, 0
        // Predicated region
        $region53: #{tpu_custom_call.1} parent=39 // pred_check
          %p459 = pneg %p458
        $region54: #{tpu_custom_call.1} parent=39 // pred_check_branch
          %461 = sbr.rel (%p459) target = $region56
        $region55: #{tpu_custom_call.1} parent=39 // pred_region
          %462 = vst [vmem:[#allocation2] sm:$0xff] 0.0
          %463 = vst [vmem:[#allocation3] sm:$0xff] 0.0
          %464 = vst [vmem:[#allocation4] sm:$0xff] 0.0
        $region56: #{tpu_custom_call.1} parent=39 // pred_fallthru
          _
        %v465 = vld [vmem:[%s441] sm:$0xff]
        %v466 = vld [vmem:[%s355] sm:$0xff]
        %v467 = vld [vmem:[%s365] sm:$0xff]
        %v468 = vld [vmem:[%s375] sm:$0xff]
        %v469 = vld [vmem:[%s445] sm:$0xff]
        %v470 = vsub.f32 %v467, %v465
        %v471 = vmul.f32 %v470, %v468
        %v472 = vmul.f32 %v471, 1.442695
        %v473 = vpow.pop %v472
        %v474 = vsub.f32 %v473, %v471
        %v475 = vsub.f32 %v474, 1.0
        %v476 = vsub.f32 %v465, %v466
        %v477 = vmul.f32 %v476, 1.442695
        %v478 = vpow.pop %v477
        %v479 = vmax.f32 %v478, 0.8
        %v480 = vmin.f32 %v479, 1.2
        %vm481 = vcmp.ge.f32.partialorder %v469, 0.0
        %v482 = vmin.f32 %v478, %v480
        %v483 = vmax.f32 %v478, %v480
        %v484 = vsel %vm481, 1, 0
        %485 = vset.pattern.permute.xlu0 0
        %486 = vperm.xlu0 %485, %v484
        %v487 = vpop.permute.xlu0 %486
        %vm488 = vcmp.eq.s32.totalorder %v487, 1
        %v489 = vsel %vm488, %v482, %v483
        %v490 = vmul.f32 %v475, 0.04
        %492 = vset.pattern.permute.xlu0 0
        %493 = vperm.xlu0 %492, %v469
        %v494 = vpop.permute.xlu0 %493
        %v496 = vmul.f32 %v489, %v494
        %v497 = vsub.f32 %v490, %v496
        %v498 = vld [vmem:[#allocation2] sm:$0xff]
        %v499 = vmul.f32 %v497, %v468
        %v500 = vadd.f32 %v498, %v499
        %501 = vst [vmem:[#allocation2] sm:$0xff] %v500
        %v502 = vld [vmem:[#allocation3] sm:$0xff]
        %v503 = vadd.f32 %v502, %v468
        %504 = vst [vmem:[#allocation3] sm:$0xff] %v503
        %v505 = vld [vmem:[#allocation4] sm:$0xff]
        %v506 = vadd.f32 %v505, %v475
        %507 = vst [vmem:[#allocation4] sm:$0xff] %v506
        // Predicated region
        $region57: #{tpu_custom_call.1} parent=39 // pred_check
          %p508 = pneg %p458
        $region58: #{tpu_custom_call.1} parent=39 // pred_check_branch
          %510 = sbr.rel (%p508) target = $region60
        $region59: #{tpu_custom_call.1} parent=39 // pred_region
          %v511 = vld [vmem:[#allocation2] sm:$0xff]
          %512 = vadd.xlane.f32.xlu0 %v511
          %v513 = vpop.xlane.xlu0 %512
          %vm514 = vcmask 7168
          %515 = vst.msk [vmem:[%s449] sm:$0xff] %vm514, %v513
          %v516 = vld [vmem:[#allocation3] sm:$0xff]
          %517 = vadd.xlane.f32.xlu0 %v516
          %v518 = vpop.xlane.xlu0 %517
          %519 = vst.msk [vmem:[%s453] sm:$0xff] %vm514, %v518
          %v520 = vld [vmem:[#allocation4] sm:$0xff]
          %521 = vadd.xlane.f32.xlu0 %v520
          %v522 = vpop.xlane.xlu0 %521
          %523 = vst.msk [vmem:[%s457] sm:$0xff] %vm514, %v522
        $region60: #{tpu_custom_call.1} parent=39 // pred_fallthru
          _
        %p524 = scmp.lt.s32.totalorder %s29, 1
        %s525 = scalar_select %p524, %s29, 1
        %s526 = smul.addr %s525, 8
        %s527 = scalar_lea.vmem %s5, %s526
        %p528 = scmp.lt.s32.totalorder %s29, 1
        %s529 = scalar_select %p528, %s29, 1
        %s530 = smul.addr %s529, 8
        %s531 = scalar_lea.vmem %s6, %s530
        %p532 = scmp.lt.s32.totalorder %s29, 1
        %s533 = scalar_select %p532, %s29, 1
        %s534 = smul.addr %s533, 8
        %s535 = scalar_lea.vmem %s7, %s534
        // Predicated region
        $region61: #{tpu_custom_call.1} parent=39 // pred_check
          %p536 = pneg %p193
        $region62: #{tpu_custom_call.1} parent=39 // pred_check_branch
          %538 = sbr.rel (%p536) target = $region64
        $region63: #{tpu_custom_call.1} parent=39 // pred_region
          _
        $region64: #{tpu_custom_call.1} parent=39 // pred_fallthru
          _
        // Predicated region
        $region65: #{tpu_custom_call.1} parent=39 // pred_check
          %p539 = pneg %p219
        $region66: #{tpu_custom_call.1} parent=39 // pred_check_branch
          %541 = sbr.rel (%p539) target = $region68
        $region67: #{tpu_custom_call.1} parent=39 // pred_region
          _
        $region68: #{tpu_custom_call.1} parent=39 // pred_fallthru
          _
        // Predicated region
        $region69: #{tpu_custom_call.1} parent=39 // pred_check
          %p542 = pneg %p245
        $region70: #{tpu_custom_call.1} parent=39 // pred_check_branch
          %544 = sbr.rel (%p542) target = $region72
        $region71: #{tpu_custom_call.1} parent=39 // pred_region
          _
        $region72: #{tpu_custom_call.1} parent=39 // pred_fallthru
          _
      $region40: #{tpu_custom_call.1} parent=5 // pred_fallthru
        _
      %p545 = scmp.le.s32.totalorder 2, %s20
      // Predicated region
      $region73: #{tpu_custom_call.1} parent=5 // pred_check
        %p546 = pneg %p545
      $region74: #{tpu_custom_call.1} parent=5 // pred_check_branch
        %548 = sbr.rel (%p546) target = $region76
      $region75: #{tpu_custom_call.1} parent=5 // pred_region
        %s549 = ssub.s32 %s20, 2
        // Predicated region
        $region77: #{tpu_custom_call.1} parent=75 // pred_check
          %p550 = pneg %p199
        $region78: #{tpu_custom_call.1} parent=75 // pred_check_branch
          %552 = sbr.rel (%p550) target = $region80
        $region79: #{tpu_custom_call.1} parent=75 // pred_region
          %p553 = scmp.lt.s32.totalorder %s31, 1
          %s554 = scalar_select %p553, %s31, 1
          %s555 = smul.addr %s554, 8
          %s556 = scalar_lea.vmem %s5, %s555
        $region80: #{tpu_custom_call.1} parent=75 // pred_fallthru
          _
        // Predicated region
        $region81: #{tpu_custom_call.1} parent=75 // pred_check
          %p557 = pneg %p225
        $region82: #{tpu_custom_call.1} parent=75 // pred_check_branch
          %559 = sbr.rel (%p557) target = $region84
        $region83: #{tpu_custom_call.1} parent=75 // pred_region
          %p560 = scmp.lt.s32.totalorder %s31, 1
          %s561 = scalar_select %p560, %s31, 1
          %s562 = smul.addr %s561, 8
          %s563 = scalar_lea.vmem %s6, %s562
        $region84: #{tpu_custom_call.1} parent=75 // pred_fallthru
          _
        // Predicated region
        $region85: #{tpu_custom_call.1} parent=75 // pred_check
          %p564 = pneg %p251
        $region86: #{tpu_custom_call.1} parent=75 // pred_check_branch
          %566 = sbr.rel (%p564) target = $region88
        $region87: #{tpu_custom_call.1} parent=75 // pred_region
          %p567 = scmp.lt.s32.totalorder %s31, 1
          %s568 = scalar_select %p567, %s31, 1
          %s569 = smul.addr %s568, 8
          %s570 = scalar_lea.vmem %s7, %s569
        $region88: #{tpu_custom_call.1} parent=75 // pred_fallthru
          _
      $region76: #{tpu_custom_call.1} parent=5 // pred_fallthru
        _
    $region6: #{tpu_custom_call.1} parent=1 // loop_footer
      %s24 = sadd.s32 1, %s20
    $region7: #{tpu_custom_call.1} parent=1 // loop_footer_branch
      %19 = sbr.rel target = $region3
    $region8: #{tpu_custom_call.1} parent=1 // loop_exit
      _
    %571 = vsyncpa [#allocation6], 1
    %s572 = scalar_lea.sflag [#allocation6], 1
    %573 = vsyncpa %s572, 1
    %574 = vsyncpa [#allocation8], 1
    %s575 = scalar_lea.sflag [#allocation8], 1
    %576 = vsyncpa %s575, 1

</llo_original>
